<compile_context>
chip_gen: v5e
topology: v5e:2x2
jax: 0.10.0
libtpu: 0.0.40
codegen_flags: <defaults>
</compile_context>

<pallas_src>
import inspect

import jax
import jax.numpy as jnp
from jax.experimental import pallas as pl
from jax.experimental.pallas import tpu as pltpu

LN_EPS = 1e-5  # torch nn.LayerNorm default
MIB = 1024 * 1024


def _round_up(x, m):
    return ((x + m - 1) // m) * m


def _probe_buffered():
    """One-time feature probe: does this jax support pipeline_mode=pl.Buffered?"""
    if not hasattr(pl, "Buffered"):
        return False
    try:
        return "pipeline_mode" in inspect.signature(pl.BlockSpec).parameters
    except (TypeError, ValueError):
        return False


_HAS_BUFFERED = _probe_buffered()


def _vmem_capacity_bytes():
    try:
        cap = getattr(pltpu.get_tpu_info(), "vmem_capacity_bytes", None)
        if cap:
            return int(cap)
    except Exception:
        pass
    return 64 * MIB  # conservative default: v7x per-TensorCore VMEM


# ----------------------------------------------------------------------------
# Kernels
# ----------------------------------------------------------------------------
def _mlp_resident_kernel(x_ref, w1_ref, b1_ref, g_ref, beta_ref, w2_ref, b2_ref,
                         o_ref):
    """Grid = (row_tiles,).  w2/b2 fully VMEM-resident (read from HBM once)."""
    # Linear1 (K zero-padded to 128 -> exact) in f32 accumulation.
    h = jnp.dot(x_ref[...], w1_ref[...],
                preferred_element_type=jnp.float32) + b1_ref[...]
    # One-pass LayerNorm: var = E[h^2] - mean^2, gamma folded into the scale.
    mean = jnp.mean(h, axis=-1, keepdims=True)
    var = jnp.mean(h * h, axis=-1, keepdims=True) - mean * mean
    scale = g_ref[...] * jax.lax.rsqrt(var + LN_EPS)
    act = jnp.maximum((h - mean) * scale + beta_ref[...], 0.0).astype(jnp.bfloat16)
    # Linear2 on the MXU, bf16 operands, f32 accumulation.
    out = jnp.dot(act, w2_ref[...],
                  preferred_element_type=jnp.float32) + b2_ref[...]
    o_ref[...] = out.astype(o_ref.dtype)


def _mlp_stream_kernel(x_ref, w1_ref, b1_ref, g_ref, beta_ref, w2_ref, b2_ref,
                       o_ref, h_ref):
    """Grid = (row_tiles, col_tiles of Linear2's output).  w2 streamed."""
    col = pl.program_id(1)

    # Linear1 + LayerNorm + ReLU once per row tile; activated hidden state
    # stays resident in a bf16 VMEM scratch for all column steps.
    @pl.when(col == 0)
    def _():
        h = jnp.dot(x_ref[...], w1_ref[...],
                    preferred_element_type=jnp.float32) + b1_ref[...]
        mean = jnp.mean(h, axis=-1, keepdims=True)
        var = jnp.mean(h * h, axis=-1, keepdims=True) - mean * mean
        scale = g_ref[...] * jax.lax.rsqrt(var + LN_EPS)
        h_ref[...] = jnp.maximum((h - mean) * scale + beta_ref[...],
                                 0.0).astype(h_ref.dtype)

    # Linear2 column block: [tm, d_model](bf16) @ [d_model, tn](bf16) -> f32.
    out = jnp.dot(h_ref[...], w2_ref[...],
                  preferred_element_type=jnp.float32) + b2_ref[...]
    o_ref[...] = out.astype(o_ref.dtype)


# ----------------------------------------------------------------------------
# pallas_call builders
# ----------------------------------------------------------------------------
def _const_spec_1d(shape):
    if _HAS_BUFFERED:
        return pl.BlockSpec(shape, lambda i: (0, 0), pipeline_mode=pl.Buffered(1))
    return pl.BlockSpec(shape, lambda i: (0, 0))


def _const_spec_2d(shape):
    if _HAS_BUFFERED:
        return pl.BlockSpec(shape, lambda i, j: (0, 0),
                            pipeline_mode=pl.Buffered(1))
    return pl.BlockSpec(shape, lambda i, j: (0, 0))


def _build_resident_call(n_pad, k_pad, d_model, d_out_pad, tm, out_dtype,
                         vmem_limit):
    grid = (n_pad // tm,)
    in_specs = [
        pl.BlockSpec((tm, k_pad), lambda i: (i, 0)),   # x   (bf16)
        _const_spec_1d((k_pad, d_model)),              # w1  (bf16)
        _const_spec_1d((1, d_model)),                  # b1
        _const_spec_1d((1, d_model)),                  # gamma
        _const_spec_1d((1, d_model)),                  # beta
        _const_spec_1d((d_model, d_out_pad)),          # w2  (bf16, resident)
        _const_spec_1d((1, d_out_pad)),                # b2
    ]
    out_spec = pl.BlockSpec((tm, d_out_pad), lambda i: (i, 0))
    itemsize = jnp.dtype(out_dtype).itemsize
    cost = pl.CostEstimate(
        flops=2 * n_pad * d_model * (k_pad + d_out_pad),
        transcendentals=n_pad,  # one rsqrt per row
        bytes_accessed=int(2 * (n_pad * k_pad + k_pad * d_model
                                + d_model * d_out_pad)
                           + 4 * (3 * d_model + d_out_pad)
                           + itemsize * n_pad * d_out_pad),
    )
    return pl.pallas_call(
        _mlp_resident_kernel,
        out_shape=jax.ShapeDtypeStruct((n_pad, d_out_pad), out_dtype),
        grid_spec=pltpu.PrefetchScalarGridSpec(
            num_scalar_prefetch=0, grid=grid,
            in_specs=in_specs, out_specs=out_spec),
        compiler_params=pltpu.CompilerParams(
            dimension_semantics=("parallel",),
            vmem_limit_bytes=vmem_limit),
        cost_estimate=cost,
    )


def _build_stream_call(n_pad, k_pad, d_model, d_out_pad, tm, tn, out_dtype,
                       vmem_limit):
    grid = (n_pad // tm, d_out_pad // tn)
    row_tiles = grid[0]
    in_specs = [
        pl.BlockSpec((tm, k_pad), lambda i, j: (i, 0)),   # x   (bf16)
        _const_spec_2d((k_pad, d_model)),                 # w1  (bf16)
        _const_spec_2d((1, d_model)),                     # b1
        _const_spec_2d((1, d_model)),                     # gamma
        _const_spec_2d((1, d_model)),                     # beta
        pl.BlockSpec((d_model, tn), lambda i, j: (0, j)),  # w2 (bf16, streamed)
        pl.BlockSpec((1, tn), lambda i, j: (0, j)),        # b2
    ]
    out_spec = pl.BlockSpec((tm, tn), lambda i, j: (i, j))
    itemsize = jnp.dtype(out_dtype).itemsize
    cost = pl.CostEstimate(
        flops=2 * n_pad * d_model * (k_pad + d_out_pad),
        transcendentals=n_pad,
        # w2 / b2 are re-fetched once per row tile under column streaming.
        bytes_accessed=int(2 * (n_pad * k_pad + k_pad * d_model)
                           + row_tiles * (2 * d_model * d_out_pad
                                          + 4 * d_out_pad)
                           + 4 * 3 * d_model
                           + itemsize * n_pad * d_out_pad),
    )
    return pl.pallas_call(
        _mlp_stream_kernel,
        out_shape=jax.ShapeDtypeStruct((n_pad, d_out_pad), out_dtype),
        grid_spec=pltpu.PrefetchScalarGridSpec(
            num_scalar_prefetch=0, grid=grid,
            in_specs=in_specs, out_specs=out_spec,
            scratch_shapes=[pltpu.VMEM((tm, d_model), jnp.bfloat16)]),
        compiler_params=pltpu.CompilerParams(
            # TODO(synk): on v7x try pltpu.CORE_PARALLEL on axis 0 if plain
            # "parallel" does not shard the row tiles across both TensorCores.
            dimension_semantics=("parallel", "arbitrary"),
            vmem_limit_bytes=vmem_limit),
        cost_estimate=cost,
    )


# ----------------------------------------------------------------------------
# Wrapper
# ----------------------------------------------------------------------------
def basic_mlp(x, w1, b1, gamma, beta, w2, b2, *,
              block_rows=512, block_cols=512, out_dtype=None,
              w2_resident=None):
    """x: [N, d_action] -> [N, d_model]  (Linear -> LayerNorm -> ReLU -> Linear).

    block_rows (tm) is the w2-reuse factor under column streaming.
    out_dtype=jnp.bfloat16 halves output HBM writeback (default: x.dtype).
    w2_resident: None=auto (VMEM budget), True/False to force a layout.
    """
    n, d_action = x.shape
    d_model = w1.shape[1]
    out_dtype = jnp.dtype(x.dtype if out_dtype is None else out_dtype)
    out_itemsize = out_dtype.itemsize
    const_bufs = 1 if _HAS_BUFFERED else 2
    vmem_cap = _vmem_capacity_bytes()

    # bf16 operands for the MXU; biases / LN params stay f32 (the kernel
    # accumulates and normalizes in f32).
    xb = x.astype(jnp.bfloat16)
    w1b = w1.astype(jnp.bfloat16)
    w2b = w2.astype(jnp.bfloat16)
    b1f = jnp.asarray(b1, jnp.float32).reshape(1, d_model)
    gf = jnp.asarray(gamma, jnp.float32).reshape(1, d_model)
    bef = jnp.asarray(beta, jnp.float32).reshape(1, d_model)
    b2f = jnp.asarray(b2, jnp.float32).reshape(1, d_model)

    # Pad K (d_action) to a multiple of 128: aligned unmasked vld for x and a
    # properly (8,128)-tiled w1; zero padding keeps the matmul exact.
    k_pad = _round_up(d_action, 128)
    if k_pad != d_action:
        xb = jnp.pad(xb, ((0, 0), (0, k_pad - d_action)))
        w1b = jnp.pad(w1b, ((0, k_pad - d_action), (0, 0)))

    # Row tile (tm = w2-reuse factor).  Bounded by the live f32 LayerNorm
    # intermediates (~2 x (tm, d_model) f32) so it fits v7x's 64 MiB VMEM.
    ln_budget = 24 * MIB
    tm_ln_cap = max(16, (ln_budget // (8 * d_model)) // 16 * 16)
    tm = min(_round_up(block_rows, 16), _round_up(n, 16), tm_ln_cap)
    n_pad = _round_up(n, tm)
    row_tiles = n_pad // tm
    # v7x has 2 TensorCores: keep the parallel row axis an even tile count.
    if row_tiles > 1 and row_tiles % 2 == 1:
        n_pad += tm
        row_tiles += 1

    # Resident-w2 layout footprint (w2 read from HBM exactly once).
    d_out_res = _round_up(d_model, 128)
    resident_bytes = (
        2 * tm * k_pad * 2                                   # x, double-buffered
        + 2 * tm * d_out_res * out_itemsize                  # out, double-buffered
        + const_bufs * ((k_pad * d_model + d_model * d_out_res) * 2
                        + (3 * d_model + d_out_res) * 4)     # weights / vectors
        + 2 * tm * d_model * 4)                              # live f32 LN temps
    if w2_resident is None:
        w2_resident = resident_bytes <= int(0.70 * vmem_cap)

    if n_pad != n:
        # Padded rows are all-zero x; they produce garbage rows through
        # LayerNorm that are sliced off below -- do NOT remove the [:n] slice.
        xb = jnp.pad(xb, ((0, n_pad - n), (0, 0)))

    if w2_resident:
        d_out_pad = d_out_res
        if d_out_pad != d_model:
            w2b = jnp.pad(w2b, ((0, 0), (0, d_out_pad - d_model)))
            b2f = jnp.pad(b2f, ((0, 0), (0, d_out_pad - d_model)))
        vmem_limit = int(min(vmem_cap - 8 * MIB,
                             max(2 * resident_bytes, 32 * MIB)))
        call = _build_resident_call(n_pad, k_pad, d_model, d_out_pad, tm,
                                    out_dtype, vmem_limit)
    else:
        # Column streaming: lane-dense tn (multiple of 128, default 512).
        tn = min(_round_up(block_cols, 128), _round_up(d_model, 128))
        d_out_pad = _round_up(d_model, tn)
        if d_out_pad != d_model:
            w2b = jnp.pad(w2b, ((0, 0), (0, d_out_pad - d_model)))
            b2f = jnp.pad(b2f, ((0, 0), (0, d_out_pad - d_model)))
        stream_bytes = (
            2 * tm * k_pad * 2 + 2 * tm * tn * out_itemsize
            + 2 * (d_model * tn * 2 + tn * 4)
            + const_bufs * (k_pad * d_model * 2 + 3 * d_model * 4)
            + tm * d_model * 2 + 2 * tm * d_model * 4)
        vmem_limit = int(min(vmem_cap - 8 * MIB,
                             max(2 * stream_bytes, 32 * MIB)))
        call = _build_stream_call(n_pad, k_pad, d_model, d_out_pad, tm, tn,
                                  out_dtype, vmem_limit)

    out = call(xb, w1b, b1f, gf, bef, w2b, b2f)
    return out[:n, :d_model]


# ----------------------------------------------------------------------------
# Init (matches the torch module) + pure-JAX reference + self-test
# ----------------------------------------------------------------------------
def _xavier_uniform(key, fan_in, fan_out, gain):
    # torch.nn.init.xavier_uniform_(weight[out,in], gain) stored transposed as
    # [in, out]; the bound depends only on (fan_in + fan_out).
    bound = gain * jnp.sqrt(6.0 / (fan_in + fan_out))
    return jax.random.uniform(key, (fan_in, fan_out), jnp.float32,
                              minval=-bound, maxval=bound)


def init_basic_mlp_params(key, d_action, d_model):
    k1, k2 = jax.random.split(key)
    w1 = _xavier_uniform(k1, d_action, d_model, gain=0.01)
    b1 = jnp.zeros((1, d_model), jnp.float32)
    gamma = jnp.ones((1, d_model), jnp.float32)
    beta = jnp.zeros((1, d_model), jnp.float32)
    w2 = _xavier_uniform(k2, d_model, d_model, gain=0.01)
    b2 = jnp.zeros((1, d_model), jnp.float32)
    return w1, b1, gamma, beta, w2, b2


def _reference(x, w1, b1, gamma, beta, w2, b2):
    # Mirrors kernel numerics: bf16-rounded matmul operands, f32 accumulation,
    # one-pass LayerNorm variance with gamma folded into the rsqrt scale, bf16
    # hidden activations.  (Difference vs. torch's two-pass LN is << LN_EPS.)
    f32 = jnp.float32
    hi = jax.lax.Precision.HIGHEST
    xb = x.astype(jnp.bfloat16).astype(f32)
    w1b = w1.astype(jnp.bfloat16).astype(f32)
    w2b = w2.astype(jnp.bfloat16).astype(f32)
    h = jnp.dot(xb, w1b, precision=hi) + b1.reshape(1, -1)
    mean = jnp.mean(h, axis=-1, keepdims=True)
    var = jnp.mean(h * h, axis=-1, keepdims=True) - mean * mean
    scale = gamma.reshape(1, -1) * jax.lax.rsqrt(var + LN_EPS)
    h = jnp.maximum((h - mean) * scale + beta.reshape(1, -1), 0.0)
    hb = h.astype(jnp.bfloat16).astype(f32)
    return jnp.dot(hb, w2b, precision=hi) + b2.reshape(1, -1)


if __name__ == "__main__":
    key = jax.random.PRNGKey(0)

    def run_case(batch, d_action, d_model, **kw):
        kx, kp = jax.random.split(jax.random.fold_in(key, batch * 1000 + d_model))
        x = jax.random.normal(kx, (batch, d_action), jnp.float32)
        params = init_basic_mlp_params(kp, d_action, d_model)
        out = jax.block_until_ready(basic_mlp(x, *params, **kw))
        ref = _reference(x, *params)
        assert out.shape == (batch, d_model), out.shape
        outf = out.astype(jnp.float32)
        err = float(jnp.max(jnp.abs(outf - ref)))
        assert jnp.allclose(outf, ref, atol=2e-4, rtol=1e-2), (
            f"mismatch vs reference (max abs err {err})")

    # Small shape consistent with the module (d_action=8, d_model=32):
    # resident-w2 path, single row tile.
    run_case(batch=8, d_action=8, d_model=32)
    # Resident-w2 path with multiple (even) row tiles and a ragged batch.
    run_case(batch=200, d_action=8, d_model=256, block_rows=64)
    # Forced column-streaming path (the v7x large-d_model regime): 2 column
    # tiles of 256, multiple row tiles, ragged batch exercising odd->even
    # row-tile padding and the bf16 hidden-state scratch.
    run_case(batch=300, d_action=8, d_model=512, block_rows=128,
             block_cols=256, w2_resident=False)

    print("KERNEL_OK")
</pallas_src>

<mosaic_0001>
module attributes {stable_mosaic.version = 11 : i64} {
  func.func @_mlp_resident_kernel(%arg0: i32, %arg1: memref<16x128xbf16, #tpu.memory_space<vmem>>, %arg2: memref<128x32xbf16, #tpu.memory_space<vmem>>, %arg3: memref<1x32xf32, #tpu.memory_space<vmem>>, %arg4: memref<1x32xf32, #tpu.memory_space<vmem>>, %arg5: memref<1x32xf32, #tpu.memory_space<vmem>>, %arg6: memref<32x128xbf16, #tpu.memory_space<vmem>>, %arg7: memref<1x128xf32, #tpu.memory_space<vmem>>, %arg8: memref<16x128xf32, #tpu.memory_space<vmem>>) attributes {dimension_semantics = [#tpu.dimension_semantics<parallel>], iteration_bounds = array<i64: 1>, scalar_prefetch = 0 : i64, scratch_operands = 0 : i64, tpu.core_type = #tpu.core_type<tc>, window_params = [{transform_indices = @transform_0, window_bounds = array<i64: 16, 128>}, {pipeline_mode = #tpu.pipeline_mode<synchronous>, transform_indices = @transform_1, window_bounds = array<i64: 128, 32>}, {pipeline_mode = #tpu.pipeline_mode<synchronous>, transform_indices = @transform_2, window_bounds = array<i64: 1, 32>}, {pipeline_mode = #tpu.pipeline_mode<synchronous>, transform_indices = @transform_3, window_bounds = array<i64: 1, 32>}, {pipeline_mode = #tpu.pipeline_mode<synchronous>, transform_indices = @transform_4, window_bounds = array<i64: 1, 32>}, {pipeline_mode = #tpu.pipeline_mode<synchronous>, transform_indices = @transform_5, window_bounds = array<i64: 32, 128>}, {pipeline_mode = #tpu.pipeline_mode<synchronous>, transform_indices = @transform_6, window_bounds = array<i64: 1, 128>}, {transform_indices = @transform_7, window_bounds = array<i64: 16, 128>}]} {
    %c0 = arith.constant 0 : index
    %c0_0 = arith.constant 0 : index
    %0 = vector.load %arg1[%c0, %c0_0] : memref<16x128xbf16, #tpu.memory_space<vmem>>, vector<16x128xbf16>
    %c0_1 = arith.constant 0 : index
    %c0_2 = arith.constant 0 : index
    %1 = vector.load %arg2[%c0_1, %c0_2] : memref<128x32xbf16, #tpu.memory_space<vmem>>, vector<128x32xbf16>
    %cst = arith.constant dense<0.000000e+00> : vector<16x32xf32>
    %2 = tpu.matmul %0, %1, %cst {dimension_numbers = #tpu.dot_dimension_numbers<[1], [0], [0], [1], [0, 0, 1, 1], [], []>} : vector<16x128xbf16>, vector<128x32xbf16>, vector<16x32xf32> -> vector<16x32xf32>
    %c0_3 = arith.constant 0 : index
    %c0_4 = arith.constant 0 : index
    %3 = vector.load %arg3[%c0_3, %c0_4] : memref<1x32xf32, #tpu.memory_space<vmem>>, vector<1x32xf32>
    %4 = vector.broadcast %3 : vector<1x32xf32> to vector<16x32xf32>
    %5 = arith.addf %2, %4 : vector<16x32xf32>
    %cst_5 = arith.constant dense<0.000000e+00> : vector<16xf32>
    %6 = vector.multi_reduction <add>, %5, %cst_5 [1] : vector<16x32xf32> to vector<16xf32>
    %7 = vector.shape_cast %6 : vector<16xf32> to vector<16x1xf32>
    %cst_6 = arith.constant 3.200000e+01 : f32
    %8 = vector.broadcast %cst_6 : f32 to vector<16x1xf32>
    %9 = arith.divf %7, %8 : vector<16x1xf32>
    %10 = arith.mulf %5, %5 : vector<16x32xf32>
    %cst_7 = arith.constant dense<0.000000e+00> : vector<16xf32>
    %11 = vector.multi_reduction <add>, %10, %cst_7 [1] : vector<16x32xf32> to vector<16xf32>
    %12 = vector.shape_cast %11 : vector<16xf32> to vector<16x1xf32>
    %cst_8 = arith.constant 3.200000e+01 : f32
    %13 = vector.broadcast %cst_8 : f32 to vector<16x1xf32>
    %14 = arith.divf %12, %13 : vector<16x1xf32>
    %15 = arith.mulf %9, %9 : vector<16x1xf32>
    %16 = arith.subf %14, %15 : vector<16x1xf32>
    %c0_9 = arith.constant 0 : index
    %c0_10 = arith.constant 0 : index
    %17 = vector.load %arg4[%c0_9, %c0_10] : memref<1x32xf32, #tpu.memory_space<vmem>>, vector<1x32xf32>
    %cst_11 = arith.constant 9.99999974E-6 : f32
    %18 = vector.broadcast %cst_11 : f32 to vector<16x1xf32>
    %19 = arith.addf %16, %18 : vector<16x1xf32>
    %20 = math.rsqrt %19 : vector<16x1xf32>
    %21 = vector.broadcast %17 : vector<1x32xf32> to vector<16x32xf32>
    %22 = vector.broadcast %20 : vector<16x1xf32> to vector<16x32xf32>
    %23 = arith.mulf %21, %22 : vector<16x32xf32>
    %24 = vector.broadcast %9 : vector<16x1xf32> to vector<16x32xf32>
    %25 = arith.subf %5, %24 : vector<16x32xf32>
    %26 = arith.mulf %25, %23 : vector<16x32xf32>
    %c0_12 = arith.constant 0 : index
    %c0_13 = arith.constant 0 : index
    %27 = vector.load %arg5[%c0_12, %c0_13] : memref<1x32xf32, #tpu.memory_space<vmem>>, vector<1x32xf32>
    %28 = vector.broadcast %27 : vector<1x32xf32> to vector<16x32xf32>
    %29 = arith.addf %26, %28 : vector<16x32xf32>
    %cst_14 = arith.constant 0.000000e+00 : f32
    %30 = vector.broadcast %cst_14 : f32 to vector<16x32xf32>
    %31 = arith.maximumf %29, %30 : vector<16x32xf32>
    %32 = arith.truncf %31 : vector<16x32xf32> to vector<16x32xbf16>
    %c0_15 = arith.constant 0 : index
    %c0_16 = arith.constant 0 : index
    %33 = vector.load %arg6[%c0_15, %c0_16] : memref<32x128xbf16, #tpu.memory_space<vmem>>, vector<32x128xbf16>
    %cst_17 = arith.constant dense<0.000000e+00> : vector<16x128xf32>
    %34 = tpu.matmul %32, %33, %cst_17 {dimension_numbers = #tpu.dot_dimension_numbers<[1], [0], [0], [1], [0, 0, 1, 1], [], []>} : vector<16x32xbf16>, vector<32x128xbf16>, vector<16x128xf32> -> vector<16x128xf32>
    %c0_18 = arith.constant 0 : index
    %c0_19 = arith.constant 0 : index
    %35 = vector.load %arg7[%c0_18, %c0_19] : memref<1x128xf32, #tpu.memory_space<vmem>>, vector<1x128xf32>
    %36 = vector.broadcast %35 : vector<1x128xf32> to vector<16x128xf32>
    %37 = arith.addf %34, %36 : vector<16x128xf32>
    %c0_20 = arith.constant 0 : index
    %c0_21 = arith.constant 0 : index
    %38 = vector.load %arg8[%c0_20, %c0_21] : memref<16x128xf32, #tpu.memory_space<vmem>>, vector<16x128xf32>
    tpu.vector_store %arg8[%c0_20, %c0_21], %37 {strides = array<i32>} : memref<16x128xf32, #tpu.memory_space<vmem>>, vector<16x128xf32>,
    return
  }
  func.func @transform_0(%arg0: i32) -> (i32, i32) {
    %c0_i32 = arith.constant 0 : i32
    %c0_i32_0 = arith.constant 0 : i32
    return %arg0, %c0_i32 : i32, i32
  }
  func.func @transform_1(%arg0: i32) -> (i32, i32) {
    %c0_i32 = arith.constant 0 : i32
    %c0_i32_0 = arith.constant 0 : i32
    %c0_i32_1 = arith.constant 0 : i32
    return %c0_i32, %c0_i32_0 : i32, i32
  }
  func.func @transform_2(%arg0: i32) -> (i32, i32) {
    %c0_i32 = arith.constant 0 : i32
    %c0_i32_0 = arith.constant 0 : i32
    %c0_i32_1 = arith.constant 0 : i32
    return %c0_i32, %c0_i32_0 : i32, i32
  }
  func.func @transform_3(%arg0: i32) -> (i32, i32) {
    %c0_i32 = arith.constant 0 : i32
    %c0_i32_0 = arith.constant 0 : i32
    %c0_i32_1 = arith.constant 0 : i32
    return %c0_i32, %c0_i32_0 : i32, i32
  }
  func.func @transform_4(%arg0: i32) -> (i32, i32) {
    %c0_i32 = arith.constant 0 : i32
    %c0_i32_0 = arith.constant 0 : i32
    %c0_i32_1 = arith.constant 0 : i32
    return %c0_i32, %c0_i32_0 : i32, i32
  }
  func.func @transform_5(%arg0: i32) -> (i32, i32) {
    %c0_i32 = arith.constant 0 : i32
    %c0_i32_0 = arith.constant 0 : i32
    %c0_i32_1 = arith.constant 0 : i32
    return %c0_i32, %c0_i32_0 : i32, i32
  }
  func.func @transform_6(%arg0: i32) -> (i32, i32) {
    %c0_i32 = arith.constant 0 : i32
    %c0_i32_0 = arith.constant 0 : i32
    %c0_i32_1 = arith.constant 0 : i32
    return %c0_i32, %c0_i32_0 : i32, i32
  }
  func.func @transform_7(%arg0: i32) -> (i32, i32) {
    %c0_i32 = arith.constant 0 : i32
    %c0_i32_0 = arith.constant 0 : i32
    return %arg0, %c0_i32 : i32, i32
  }
}

</mosaic_0001>

<llo_original>
// kernel: tpu_custom_call.1
$region0: #{tpu_custom_call.1}
  #allocation0 [shape = 'u32[]', space=smem, size = 0x4, offset = 0x4, fixed_abs, tag = 'smem constant byte address 0x4 - core index']
  #allocation1 [shape = 'u32[72,128]{1,0:T(1,128)}', space=vmem, size = 0x9000, scoped, tag = 'internal scratch']
  %s0 = inlined_call_operand.vmem [shape: bf16[16,128], index: 0, kind: input, shape index: {}]
  %s1 = inlined_call_operand.vmem [shape: bf16[128,32], index: 1, kind: input, shape index: {}]
  %s2 = inlined_call_operand.vmem [shape: f32[1,32], index: 2, kind: input, shape index: {}]
  %s3 = inlined_call_operand.vmem [shape: f32[1,32], index: 3, kind: input, shape index: {}]
  %s4 = inlined_call_operand.vmem [shape: f32[1,32], index: 4, kind: input, shape index: {}]
  %s5 = inlined_call_operand.vmem [shape: bf16[32,128], index: 5, kind: input, shape index: {}]
  %s6 = inlined_call_operand.vmem [shape: f32[1,128], index: 6, kind: input, shape index: {}]
  %s7 = inlined_call_operand.hbm [shape: f32[16,128], index: 7, kind: output, shape index: {}]
  %s8 = sld [smem:[#allocation0]]
  $region38: #{tpu_custom_call.1} parent=0
    _
  %s10 = ssub.s32 1, %s8
  %s11 = scalar_select 0, %s10, %s8
  $region1: #{tpu_custom_call.1} parent=0
    #allocation2 [shape = 'u8[8192]{0}', space=vmem, size = 0x2000, scoped, tag = 'output window, operand 0, single buffered']
    #allocation3 [shape = 's32[1]{0}', space=sflag, size = 0x4, scoped, tag = 'scoped memory for tpu_custom_call.1']
    %12 = vsyncpa [#allocation3], 0
    // Predicated region
    $region2: #{tpu_custom_call.1} parent=1 // pred_check
      _
    $region3: #{tpu_custom_call.1} parent=1 // pred_check_branch
      %14 = sbr.rel (0) target = $region5
    $region4: #{tpu_custom_call.1} parent=1 // pred_region
      _
    $region5: #{tpu_custom_call.1} parent=1 // pred_fallthru
      _
    // Predicated region
    $region6: #{tpu_custom_call.1} parent=1 // pred_check
      _
    $region7: #{tpu_custom_call.1} parent=1 // pred_check_branch
      %16 = sbr.rel (0) target = $region9
    $region8: #{tpu_custom_call.1} parent=1 // pred_region
      _
    $region9: #{tpu_custom_call.1} parent=1 // pred_fallthru
      _
    // Predicated region
    $region10: #{tpu_custom_call.1} parent=1 // pred_check
      _
    $region11: #{tpu_custom_call.1} parent=1 // pred_check_branch
      %18 = sbr.rel (0) target = $region13
    $region12: #{tpu_custom_call.1} parent=1 // pred_region
      _
    $region13: #{tpu_custom_call.1} parent=1 // pred_fallthru
      _
    // Predicated region
    $region14: #{tpu_custom_call.1} parent=1 // pred_check
      _
    $region15: #{tpu_custom_call.1} parent=1 // pred_check_branch
      %20 = sbr.rel (0) target = $region17
    $region16: #{tpu_custom_call.1} parent=1 // pred_region
      _
    $region17: #{tpu_custom_call.1} parent=1 // pred_fallthru
      _
    // Predicated region
    $region18: #{tpu_custom_call.1} parent=1 // pred_check
      _
    $region19: #{tpu_custom_call.1} parent=1 // pred_check_branch
      %22 = sbr.rel (0) target = $region21
    $region20: #{tpu_custom_call.1} parent=1 // pred_region
      _
    $region21: #{tpu_custom_call.1} parent=1 // pred_fallthru
      _
    // Predicated region
    $region22: #{tpu_custom_call.1} parent=1 // pred_check
      _
    $region23: #{tpu_custom_call.1} parent=1 // pred_check_branch
      %24 = sbr.rel (0) target = $region25
    $region24: #{tpu_custom_call.1} parent=1 // pred_region
      _
    $region25: #{tpu_custom_call.1} parent=1 // pred_fallthru
      _
    // Predicated region
    $region26: #{tpu_custom_call.1} parent=1 // pred_check
      _
    $region27: #{tpu_custom_call.1} parent=1 // pred_check_branch
      %26 = sbr.rel (0) target = $region29
    $region28: #{tpu_custom_call.1} parent=1 // pred_region
      _
    $region29: #{tpu_custom_call.1} parent=1 // pred_fallthru
      _
    %v28 = vld [vmem:[%s0] sm:$0xf]
    %v29 = vld [vmem:[%s0 + $0x4] sm:$0xf]
    %v30 = vld [vmem:[%s1] sm:$0xf]
    %v31 = vld [vmem:[%s1 + $0x4] sm:$0xf]
    %v32 = vld [vmem:[%s1 + $0x8] sm:$0xf]
    %v33 = vld [vmem:[%s1 + $0xc] sm:$0xf]
    %v34 = vld [vmem:[%s1 + $0x10] sm:$0xf]
    %v35 = vld [vmem:[%s1 + $0x14] sm:$0xf]
    %v36 = vld [vmem:[%s1 + $0x18] sm:$0xf]
    %v37 = vld [vmem:[%s1 + $0x1c] sm:$0xf]
    %v38 = vld [vmem:[%s1 + $0x20] sm:$0xf]
    %v39 = vld [vmem:[%s1 + $0x24] sm:$0xf]
    %v40 = vld [vmem:[%s1 + $0x28] sm:$0xf]
    %v41 = vld [vmem:[%s1 + $0x2c] sm:$0xf]
    %v42 = vld [vmem:[%s1 + $0x30] sm:$0xf]
    %v43 = vld [vmem:[%s1 + $0x34] sm:$0xf]
    %v44 = vld [vmem:[%s1 + $0x38] sm:$0xf]
    %v45 = vld [vmem:[%s1 + $0x3c] sm:$0xf]
    %v46 = vld [vmem:[%s2] sm:$0x1]
    %v48 = vperm.slane %v46, 0
    %v52 = vunpack.c.l.b16 %v28
    %v53 = vunpack.c.l.b16 %v29
    %v54 = vpack.c.b16 %v53, %v52
    %v72 = vunpack.c.l.b16 %v30
    %v73 = vunpack.c.l.b16 %v31
    %v74 = vunpack.c.l.b16 %v32
    %v75 = vunpack.c.l.b16 %v33
    %v76 = vunpack.c.l.b16 %v34
    %v77 = vunpack.c.l.b16 %v35
    %v78 = vunpack.c.l.b16 %v36
    %v79 = vunpack.c.l.b16 %v37
    %v80 = vunpack.c.l.b16 %v38
    %v81 = vunpack.c.l.b16 %v39
    %v82 = vunpack.c.l.b16 %v40
    %v83 = vunpack.c.l.b16 %v41
    %v84 = vunpack.c.l.b16 %v42
    %v85 = vunpack.c.l.b16 %v43
    %v86 = vunpack.c.l.b16 %v44
    %v87 = vunpack.c.l.b16 %v45
    %v88 = vpack.c.b16 %v73, %v72
    %v89 = vpack.c.b16 %v75, %v74
    %v90 = vpack.c.b16 %v77, %v76
    %v91 = vpack.c.b16 %v79, %v78
    %v92 = vpack.c.b16 %v81, %v80
    %v93 = vpack.c.b16 %v83, %v82
    %v94 = vpack.c.b16 %v85, %v84
    %v95 = vpack.c.b16 %v87, %v86
    %104 = vmatpush.bf16.msra.mxu0 %v95
    %105 = vmatpush.bf16.msra.mxu0 %v94
    %106 = vmatpush.bf16.msra.mxu0 %v93
    %107 = vmatpush.bf16.msra.mxu0 %v92
    %108 = vmatpush.bf16.msra.mxu0 %v91
    %109 = vmatpush.bf16.msra.mxu0 %v90
    %110 = vmatpush.bf16.msra.mxu0 %v89
    %111 = vmatpush.bf16.msra.mxu0 %v88
    %112 = vmatmul.bf16.gmra.mxu0 %v54
    %v113 = vpop.f32.mrf.mxu0
    %v114 = vadd.f32 %v48, %v113
    %v115 = vpop.f32.mrf.mxu0
    %v116 = vadd.f32 %v48, %v115
    %117 = vdwg.mxu0
    %vm118 = vcmask 261120
    %v119 = vsel %vm118, %v114, 0.0
    %120 = vadd.xlane.f32.xlu0 %v119
    %v121 = vpop.xlane.xlu0 %120
    %v122 = vsel %vm118, %v116, 0.0
    %123 = vadd.xlane.f32.xlu0 %v122
    %v124 = vpop.xlane.xlu0 %123
    %v125 = vrcp.pop 32.0
    %v126 = vmul.f32 32.0, %v125
    %v127 = vsub.f32 1.0, %v126
    %v128 = vmul.f32 %v125, %v127
    %v129 = vadd.f32 %v125, %v128
    %vm130 = vweird.f32 %v125
    %v131 = vsel %vm130, %v125, %v129
    %v132 = vmul.f32 %v121, %v131
    %v133 = vmul.f32 %v124, %v131
    %v134 = vmul.f32 %v114, %v114
    %v135 = vmul.f32 %v116, %v116
    %v136 = vsel %vm118, %v134, 0.0
    %137 = vadd.xlane.f32.xlu0 %v136
    %v138 = vpop.xlane.xlu0 %137
    %v139 = vsel %vm118, %v135, 0.0
    %140 = vadd.xlane.f32.xlu0 %v139
    %v141 = vpop.xlane.xlu0 %140
    %v142 = vmul.f32 %v138, %v131
    %v143 = vmul.f32 %v141, %v131
    %v144 = vmul.f32 %v132, %v132
    %v145 = vmul.f32 %v133, %v133
    %v146 = vsub.f32 %v142, %v144
    %v147 = vsub.f32 %v143, %v145
    %v148 = vld [vmem:[%s3] sm:$0x1]
    %v149 = vadd.f32 %v146, 1e-05
    %v150 = vadd.f32 %v147, 1e-05
    %v151 = vrsqrt.pop %v149
    %v152 = vmul.f32 %v151, %v149
    %v153 = vmul.f32 %v152, %v151
    %v154 = vmul.f32 0.5, %v153
    %v155 = vsub.f32 1.5, %v154
    %v156 = vmul.f32 %v151, %v155
    %vm157 = vweird.f32 %v149
    %vm158 = vweird.f32 %v151
    %vm159 = vmor %vm157, %vm158
    %v160 = vsel %vm159, %v151, %v156
    %v161 = vrsqrt.pop %v150
    %v162 = vmul.f32 %v161, %v150
    %v163 = vmul.f32 %v162, %v161
    %v164 = vmul.f32 0.5, %v163
    %v165 = vsub.f32 1.5, %v164
    %v166 = vmul.f32 %v161, %v165
    %vm167 = vweird.f32 %v150
    %vm168 = vweird.f32 %v161
    %vm169 = vmor %vm167, %vm168
    %v170 = vsel %vm169, %v161, %v166
    %v172 = vperm.slane %v148, 0
    %v174 = vmul.f32 %v172, %v160
    %v175 = vmul.f32 %v172, %v170
    %v176 = vsub.f32 %v114, %v132
    %v177 = vsub.f32 %v116, %v133
    %v178 = vmul.f32 %v176, %v174
    %v179 = vmul.f32 %v177, %v175
    %v180 = vld [vmem:[%s4] sm:$0x1]
    %v182 = vperm.slane %v180, 0
    %v184 = vadd.f32 %v178, %v182
    %v185 = vadd.f32 %v179, %v182
    %v186 = vmax.f32 %v184, 0.0
    %v187 = vmax.f32 %v185, 0.0
    %v188 = vpack.c.bf16 %v187, %v186
    %v189 = vld [vmem:[%s5] sm:$0xf]
    %v190 = vld [vmem:[%s5 + $0x4] sm:$0xf]
    %v191 = vld [vmem:[%s5 + $0x8] sm:$0xf]
    %v192 = vld [vmem:[%s5 + $0xc] sm:$0xf]
    %v193 = vld [vmem:[%s6] sm:$0x1]
    %v195 = vperm.slane %v193, 0
    %v201 = vunpack.c.l.b16 %v189
    %v202 = vunpack.c.l.b16 %v190
    %v203 = vunpack.c.l.b16 %v191
    %v204 = vunpack.c.l.b16 %v192
    %v205 = vpack.c.b16 %v202, %v201
    %v206 = vpack.c.b16 %v204, %v203
    %v210 = vsel %vm118, %v188, 0
    %212 = vmatpush.bf16.msra.mxu0 0
    %213 = vmatpush.bf16.msra.mxu0 0
    %214 = vmatpush.bf16.msra.mxu0 0
    %215 = vmatpush.bf16.msra.mxu0 0
    %216 = vmatpush.bf16.msra.mxu0 0
    %217 = vmatpush.bf16.msra.mxu0 0
    %218 = vmatpush.bf16.msra.mxu0 %v206
    %219 = vmatpush.bf16.msra.mxu0 %v205
    %220 = vmatmul.bf16.gmra.mxu0 %v210
    %v221 = vpop.f32.mrf.mxu0
    %v222 = vadd.f32 %v195, %v221
    %v223 = vpop.f32.mrf.mxu0
    %v224 = vadd.f32 %v195, %v223
    %225 = vdwg.mxu0
    %226 = vst [vmem:[#allocation2] sm:$0xff] %v222
    %227 = vst [vmem:[#allocation2 + $0x8] sm:$0xff] %v224
    // Predicated region
    $region30: #{tpu_custom_call.1} parent=1 // pred_check
      _
    $region31: #{tpu_custom_call.1} parent=1 // pred_check_branch
      %229 = sbr.rel (0) target = $region33
    $region32: #{tpu_custom_call.1} parent=1 // pred_region
      %231 = vsyncadd [#allocation3], 0
      %s232 = sshll.u32 [#allocation2], 4
      %s233 = int_to_ptr.vmem [resolvable:$true] %s232
      %s234 = sshll.u32 %s7, 4
      %s235 = int_to_ptr.hbm [resolvable:$true] %s234
      %240 = dma.vmem_to_hbm [thread:$0]  %s233, 256, %s235, [#allocation3], 128, 128, 8
    $region33: #{tpu_custom_call.1} parent=1 // pred_fallthru
      _
    // Predicated region
    $region34: #{tpu_custom_call.1} parent=1 // pred_check
      _
    $region35: #{tpu_custom_call.1} parent=1 // pred_check_branch
      %242 = sbr.rel (0) target = $region37
    $region36: #{tpu_custom_call.1} parent=1 // pred_region
      %244 = dma.done [#allocation3], 256
    $region37: #{tpu_custom_call.1} parent=1 // pred_fallthru
      _
    %245 = vsyncpa [#allocation3], 1

</llo_original>
